<compile_context>
chip_gen: v7x
topology: tpu7x:2x2x1
jax: 0.10.0
libtpu: 0.0.40
codegen_flags: <defaults>
</compile_context>

<pallas_src>
import jax
import jax.numpy as jnp
from jax.experimental import pallas as pl
from jax.experimental.pallas import tpu as pltpu

_SUBLANE = 8  # f32 sublane count


def _mlp_kernel(x_ref, w1_ref, b1_ref, w2_ref, b2_ref, w3_ref, b3_ref, o_ref):
    """One batch tile of the fused 3-layer MLP + softmax.

    x:  (TB, I) f32      w1: (I, H) f32    b1: (1, H) f32
                         w2: (H, H) bf16   b2: (1, H) f32
                         w3: (H, O) bf16   b3: (1, O) f32
    out: (TB, O) f32  -- softmax over the last axis.
    """
    x = x_ref[...]                       # (TB, I) f32
    w1 = w1_ref[...]                     # (I, H)  f32
    in_size = x.shape[1]                 # static (8)

    # --- fc1 + relu: tiny contraction (K=8) as VPU broadcast-FMAs (skips an MXU pass).
    h = x[:, 0:1] * w1[0:1, :] + b1_ref[...]
    for k in range(1, in_size):          # static unroll; in_size is a trace-time constant
        h = h + x[:, k:k + 1] * w1[k:k + 1, :]
    h = jnp.maximum(h, 0.0)
    # dropout: identity at inference

    # --- fc2 + relu: bf16 MXU operands, f32 accumulation.
    h = jnp.dot(h.astype(jnp.bfloat16), w2_ref[...],
                preferred_element_type=jnp.float32) + b2_ref[...]
    h = jnp.maximum(h, 0.0)
    # dropout: identity at inference

    # --- fc3: bf16 MXU operands, f32 accumulation; compact (TB, O) logits.
    logits = jnp.dot(h.astype(jnp.bfloat16), w3_ref[...],
                     preferred_element_type=jnp.float32) + b3_ref[...]

    # --- numerically-stable softmax; reciprocal-multiply instead of broadcast divide.
    m = jnp.max(logits, axis=-1, keepdims=True)
    e = jnp.exp(logits - m)
    s = jnp.sum(e, axis=-1, keepdims=True)
    o_ref[...] = (e * pl.reciprocal(s, approx=False)).astype(o_ref.dtype)


def prepare_params(params):
    """One-time weight prep (hoisted out of the per-call path).

    fc2/fc3 weights -> bf16 (MXU operands); fc1 weights and all biases stay f32
    (fc1 runs on the VPU, biases are added in the f32 accumulator path).
    """
    w1, b1, w2, b2, w3, b3 = params
    return (w1.astype(jnp.float32), b1.astype(jnp.float32),
            w2.astype(jnp.bfloat16), b2.astype(jnp.float32),
            w3.astype(jnp.bfloat16), b3.astype(jnp.float32))


def game_ai_agent_forward(x, prepared_params, *, block_batch=2048):
    """GameAIAgent forward as a single batch-tiled Pallas TPU kernel."""
    w1, b1, w2, b2, w3, b3 = prepared_params
    B, I = x.shape
    H = w1.shape[1]
    O = w3.shape[1]

    # Batch tile: multiple of the f32 sublane count, capped for grid-step amortization,
    # and chosen so grid >= 2 whenever B allows (uses both TensorCores on v7x).
    half = (B + 1) // 2
    TB = min(block_batch, ((half + _SUBLANE - 1) // _SUBLANE) * _SUBLANE)
    TB = max(TB, _SUBLANE)
    BP = pl.cdiv(B, TB) * TB
    if BP != B:
        x = jnp.pad(x, ((0, BP - B), (0, 0)))   # zero rows; sliced off after the call

    grid = (BP // TB,)

    cost = pl.CostEstimate(
        flops=2 * BP * (I * H + H * H + H * O),
        transcendentals=BP * O,
        bytes_accessed=(4 * (BP * I + I * H + 2 * H + O + BP * O)   # f32 traffic
                        + 2 * (H * H + H * O)),                     # bf16 weights
    )

    out = pl.pallas_call(
        _mlp_kernel,
        out_shape=jax.ShapeDtypeStruct((BP, O), jnp.float32),
        grid=grid,
        in_specs=[
            pl.BlockSpec((TB, I), lambda i: (i, 0)),   # x: streamed per batch tile
            pl.BlockSpec((I, H), lambda i: (0, 0)),    # weights/biases: VMEM-resident
            pl.BlockSpec((1, H), lambda i: (0, 0)),
            pl.BlockSpec((H, H), lambda i: (0, 0)),
            pl.BlockSpec((1, H), lambda i: (0, 0)),
            pl.BlockSpec((H, O), lambda i: (0, 0)),
            pl.BlockSpec((1, O), lambda i: (0, 0)),
        ],
        out_specs=pl.BlockSpec((TB, O), lambda i: (i, 0)),
        compiler_params=pltpu.CompilerParams(dimension_semantics=("parallel",)),
        cost_estimate=cost,
    )(x, w1, b1, w2, b2, w3, b3)

    return out[:B]   # drop padded batch rows only (output already has compact width O)


def init_params(key, input_size=8, hidden_size=128, output_size=4):
    """Deterministic synthetic parameters (shapes match the PyTorch module).

    Weights are stored transposed relative to nn.Linear.weight ([out,in] -> [in,out]),
    so the kernel computes x @ W + b directly.
    """
    k1, k2, k3, k4, k5, k6 = jax.random.split(key, 6)
    w1 = jax.random.normal(k1, (input_size, hidden_size), jnp.float32) * 0.1
    b1 = jax.random.normal(k2, (1, hidden_size), jnp.float32) * 0.01
    w2 = jax.random.normal(k3, (hidden_size, hidden_size), jnp.float32) * 0.1
    b2 = jax.random.normal(k4, (1, hidden_size), jnp.float32) * 0.01
    w3 = jax.random.normal(k5, (hidden_size, output_size), jnp.float32) * 0.1
    b3 = jax.random.normal(k6, (1, output_size), jnp.float32) * 0.01
    return (w1, b1, w2, b2, w3, b3)


def reference_forward(x, params):
    """Pure-JAX f32 reference for correctness checking."""
    w1, b1, w2, b2, w3, b3 = params
    h1 = jnp.maximum(x @ w1 + b1, 0.0)
    h2 = jnp.maximum(h1 @ w2 + b2, 0.0)
    logits = h2 @ w3 + b3
    return jax.nn.softmax(logits, axis=-1)


if __name__ == "__main__":
    key = jax.random.PRNGKey(0)
    k_params, k_x = jax.random.split(key)

    input_size, hidden_size, output_size = 8, 128, 4
    batch = 2

    params = init_params(k_params, input_size, hidden_size, output_size)
    prepped = prepare_params(params)   # one-time bf16 weight prep, outside the call path
    x = jax.random.normal(k_x, (batch, input_size), jnp.float32)

    out = jax.block_until_ready(game_ai_agent_forward(x, prepped))
    ref = reference_forward(x, params)

    assert out.shape == (batch, output_size)
    # bf16 MXU operands (f32 accumulation) -> compare against the f32 reference with a
    # bf16-appropriate tolerance, per the perf-review correctness note.
    assert jnp.allclose(out, ref, atol=1e-2, rtol=1e-2), "mismatch vs reference"
    assert jnp.allclose(jnp.sum(out, axis=-1), 1.0, atol=1e-4), "softmax rows must sum to 1"

    print("KERNEL_OK")
</pallas_src>

<mosaic_0001>
module attributes {stable_mosaic.version = 11 : i64} {
  func.func @_mlp_kernel(%arg0: i32, %arg1: memref<8x8xf32, #tpu.memory_space<vmem>>, %arg2: memref<8x128xf32, #tpu.memory_space<vmem>>, %arg3: memref<1x128xf32, #tpu.memory_space<vmem>>, %arg4: memref<128x128xbf16, #tpu.memory_space<vmem>>, %arg5: memref<1x128xf32, #tpu.memory_space<vmem>>, %arg6: memref<128x4xbf16, #tpu.memory_space<vmem>>, %arg7: memref<1x4xf32, #tpu.memory_space<vmem>>, %arg8: memref<8x4xf32, #tpu.memory_space<vmem>>) attributes {dimension_semantics = [#tpu.dimension_semantics<parallel>], iteration_bounds = array<i64: 1>, scalar_prefetch = 0 : i64, scratch_operands = 0 : i64, tpu.core_type = #tpu.core_type<tc>, window_params = [{transform_indices = @transform_0, window_bounds = array<i64: 8, 8>}, {pipeline_mode = #tpu.pipeline_mode<synchronous>, transform_indices = @transform_1, window_bounds = array<i64: 8, 128>}, {pipeline_mode = #tpu.pipeline_mode<synchronous>, transform_indices = @transform_2, window_bounds = array<i64: 1, 128>}, {pipeline_mode = #tpu.pipeline_mode<synchronous>, transform_indices = @transform_3, window_bounds = array<i64: 128, 128>}, {pipeline_mode = #tpu.pipeline_mode<synchronous>, transform_indices = @transform_4, window_bounds = array<i64: 1, 128>}, {pipeline_mode = #tpu.pipeline_mode<synchronous>, transform_indices = @transform_5, window_bounds = array<i64: 128, 4>}, {pipeline_mode = #tpu.pipeline_mode<synchronous>, transform_indices = @transform_6, window_bounds = array<i64: 1, 4>}, {transform_indices = @transform_7, window_bounds = array<i64: 8, 4>}]} {
    %c0 = arith.constant 0 : index
    %c0_0 = arith.constant 0 : index
    %0 = vector.load %arg1[%c0, %c0_0] : memref<8x8xf32, #tpu.memory_space<vmem>>, vector<8x8xf32>
    %c0_1 = arith.constant 0 : index
    %c0_2 = arith.constant 0 : index
    %1 = vector.load %arg2[%c0_1, %c0_2] : memref<8x128xf32, #tpu.memory_space<vmem>>, vector<8x128xf32>
    %2 = vector.extract_strided_slice %0 {offsets = [0, 0], sizes = [8, 1], strides = [1, 1]} : vector<8x8xf32> to vector<8x1xf32>
    %3 = vector.extract_strided_slice %1 {offsets = [0, 0], sizes = [1, 128], strides = [1, 1]} : vector<8x128xf32> to vector<1x128xf32>
    %4 = vector.broadcast %2 : vector<8x1xf32> to vector<8x128xf32>
    %5 = vector.broadcast %3 : vector<1x128xf32> to vector<8x128xf32>
    %6 = arith.mulf %4, %5 : vector<8x128xf32>
    %c0_3 = arith.constant 0 : index
    %c0_4 = arith.constant 0 : index
    %7 = vector.load %arg3[%c0_3, %c0_4] : memref<1x128xf32, #tpu.memory_space<vmem>>, vector<1x128xf32>
    %8 = vector.broadcast %7 : vector<1x128xf32> to vector<8x128xf32>
    %9 = arith.addf %6, %8 : vector<8x128xf32>
    %10 = vector.extract_strided_slice %0 {offsets = [0, 1], sizes = [8, 1], strides = [1, 1]} : vector<8x8xf32> to vector<8x1xf32>
    %11 = vector.extract_strided_slice %1 {offsets = [1, 0], sizes = [1, 128], strides = [1, 1]} : vector<8x128xf32> to vector<1x128xf32>
    %12 = vector.broadcast %10 : vector<8x1xf32> to vector<8x128xf32>
    %13 = vector.broadcast %11 : vector<1x128xf32> to vector<8x128xf32>
    %14 = arith.mulf %12, %13 : vector<8x128xf32>
    %15 = arith.addf %9, %14 : vector<8x128xf32>
    %16 = vector.extract_strided_slice %0 {offsets = [0, 2], sizes = [8, 1], strides = [1, 1]} : vector<8x8xf32> to vector<8x1xf32>
    %17 = vector.extract_strided_slice %1 {offsets = [2, 0], sizes = [1, 128], strides = [1, 1]} : vector<8x128xf32> to vector<1x128xf32>
    %18 = vector.broadcast %16 : vector<8x1xf32> to vector<8x128xf32>
    %19 = vector.broadcast %17 : vector<1x128xf32> to vector<8x128xf32>
    %20 = arith.mulf %18, %19 : vector<8x128xf32>
    %21 = arith.addf %15, %20 : vector<8x128xf32>
    %22 = vector.extract_strided_slice %0 {offsets = [0, 3], sizes = [8, 1], strides = [1, 1]} : vector<8x8xf32> to vector<8x1xf32>
    %23 = vector.extract_strided_slice %1 {offsets = [3, 0], sizes = [1, 128], strides = [1, 1]} : vector<8x128xf32> to vector<1x128xf32>
    %24 = vector.broadcast %22 : vector<8x1xf32> to vector<8x128xf32>
    %25 = vector.broadcast %23 : vector<1x128xf32> to vector<8x128xf32>
    %26 = arith.mulf %24, %25 : vector<8x128xf32>
    %27 = arith.addf %21, %26 : vector<8x128xf32>
    %28 = vector.extract_strided_slice %0 {offsets = [0, 4], sizes = [8, 1], strides = [1, 1]} : vector<8x8xf32> to vector<8x1xf32>
    %29 = vector.extract_strided_slice %1 {offsets = [4, 0], sizes = [1, 128], strides = [1, 1]} : vector<8x128xf32> to vector<1x128xf32>
    %30 = vector.broadcast %28 : vector<8x1xf32> to vector<8x128xf32>
    %31 = vector.broadcast %29 : vector<1x128xf32> to vector<8x128xf32>
    %32 = arith.mulf %30, %31 : vector<8x128xf32>
    %33 = arith.addf %27, %32 : vector<8x128xf32>
    %34 = vector.extract_strided_slice %0 {offsets = [0, 5], sizes = [8, 1], strides = [1, 1]} : vector<8x8xf32> to vector<8x1xf32>
    %35 = vector.extract_strided_slice %1 {offsets = [5, 0], sizes = [1, 128], strides = [1, 1]} : vector<8x128xf32> to vector<1x128xf32>
    %36 = vector.broadcast %34 : vector<8x1xf32> to vector<8x128xf32>
    %37 = vector.broadcast %35 : vector<1x128xf32> to vector<8x128xf32>
    %38 = arith.mulf %36, %37 : vector<8x128xf32>
    %39 = arith.addf %33, %38 : vector<8x128xf32>
    %40 = vector.extract_strided_slice %0 {offsets = [0, 6], sizes = [8, 1], strides = [1, 1]} : vector<8x8xf32> to vector<8x1xf32>
    %41 = vector.extract_strided_slice %1 {offsets = [6, 0], sizes = [1, 128], strides = [1, 1]} : vector<8x128xf32> to vector<1x128xf32>
    %42 = vector.broadcast %40 : vector<8x1xf32> to vector<8x128xf32>
    %43 = vector.broadcast %41 : vector<1x128xf32> to vector<8x128xf32>
    %44 = arith.mulf %42, %43 : vector<8x128xf32>
    %45 = arith.addf %39, %44 : vector<8x128xf32>
    %46 = vector.extract_strided_slice %0 {offsets = [0, 7], sizes = [8, 1], strides = [1, 1]} : vector<8x8xf32> to vector<8x1xf32>
    %47 = vector.extract_strided_slice %1 {offsets = [7, 0], sizes = [1, 128], strides = [1, 1]} : vector<8x128xf32> to vector<1x128xf32>
    %48 = vector.broadcast %46 : vector<8x1xf32> to vector<8x128xf32>
    %49 = vector.broadcast %47 : vector<1x128xf32> to vector<8x128xf32>
    %50 = arith.mulf %48, %49 : vector<8x128xf32>
    %51 = arith.addf %45, %50 : vector<8x128xf32>
    %cst = arith.constant 0.000000e+00 : f32
    %52 = vector.broadcast %cst : f32 to vector<8x128xf32>
    %53 = arith.maximumf %51, %52 : vector<8x128xf32>
    %54 = arith.truncf %53 : vector<8x128xf32> to vector<8x128xbf16>
    %c0_5 = arith.constant 0 : index
    %c0_6 = arith.constant 0 : index
    %55 = vector.load %arg4[%c0_5, %c0_6] : memref<128x128xbf16, #tpu.memory_space<vmem>>, vector<128x128xbf16>
    %cst_7 = arith.constant dense<0.000000e+00> : vector<8x128xf32>
    %56 = tpu.matmul %54, %55, %cst_7 {dimension_numbers = #tpu.dot_dimension_numbers<[1], [0], [0], [1], [0, 0, 1, 1], [], []>} : vector<8x128xbf16>, vector<128x128xbf16>, vector<8x128xf32> -> vector<8x128xf32>
    %c0_8 = arith.constant 0 : index
    %c0_9 = arith.constant 0 : index
    %57 = vector.load %arg5[%c0_8, %c0_9] : memref<1x128xf32, #tpu.memory_space<vmem>>, vector<1x128xf32>
    %58 = vector.broadcast %57 : vector<1x128xf32> to vector<8x128xf32>
    %59 = arith.addf %56, %58 : vector<8x128xf32>
    %cst_10 = arith.constant 0.000000e+00 : f32
    %60 = vector.broadcast %cst_10 : f32 to vector<8x128xf32>
    %61 = arith.maximumf %59, %60 : vector<8x128xf32>
    %62 = arith.truncf %61 : vector<8x128xf32> to vector<8x128xbf16>
    %c0_11 = arith.constant 0 : index
    %c0_12 = arith.constant 0 : index
    %63 = vector.load %arg6[%c0_11, %c0_12] : memref<128x4xbf16, #tpu.memory_space<vmem>>, vector<128x4xbf16>
    %cst_13 = arith.constant dense<0.000000e+00> : vector<8x4xf32>
    %64 = tpu.matmul %62, %63, %cst_13 {dimension_numbers = #tpu.dot_dimension_numbers<[1], [0], [0], [1], [0, 0, 1, 1], [], []>} : vector<8x128xbf16>, vector<128x4xbf16>, vector<8x4xf32> -> vector<8x4xf32>
    %c0_14 = arith.constant 0 : index
    %c0_15 = arith.constant 0 : index
    %65 = vector.load %arg7[%c0_14, %c0_15] : memref<1x4xf32, #tpu.memory_space<vmem>>, vector<1x4xf32>
    %66 = vector.broadcast %65 : vector<1x4xf32> to vector<8x4xf32>
    %67 = arith.addf %64, %66 : vector<8x4xf32>
    %cst_16 = arith.constant dense<0xFF800000> : vector<8xf32>
    %68 = vector.multi_reduction <maximumf>, %67, %cst_16 [1] : vector<8x4xf32> to vector<8xf32>
    %69 = vector.shape_cast %68 : vector<8xf32> to vector<8x1xf32>
    %70 = vector.broadcast %69 : vector<8x1xf32> to vector<8x4xf32>
    %71 = arith.subf %67, %70 : vector<8x4xf32>
    %72 = math.exp %71 : vector<8x4xf32>
    %cst_17 = arith.constant dense<0.000000e+00> : vector<8xf32>
    %73 = vector.multi_reduction <add>, %72, %cst_17 [1] : vector<8x4xf32> to vector<8xf32>
    %74 = vector.shape_cast %73 : vector<8xf32> to vector<8x1xf32>
    %75 = tpu.reciprocal %74 : vector<8x1xf32> -> vector<8x1xf32>
    %76 = vector.broadcast %75 : vector<8x1xf32> to vector<8x4xf32>
    %77 = arith.mulf %72, %76 : vector<8x4xf32>
    %c0_18 = arith.constant 0 : index
    %c0_19 = arith.constant 0 : index
    %78 = vector.load %arg8[%c0_18, %c0_19] : memref<8x4xf32, #tpu.memory_space<vmem>>, vector<8x4xf32>
    tpu.vector_store %arg8[%c0_18, %c0_19], %77 {strides = array<i32>} : memref<8x4xf32, #tpu.memory_space<vmem>>, vector<8x4xf32>,
    return
  }
  func.func @transform_0(%arg0: i32) -> (i32, i32) {
    %c0_i32 = arith.constant 0 : i32
    %c0_i32_0 = arith.constant 0 : i32
    return %arg0, %c0_i32 : i32, i32
  }
  func.func @transform_1(%arg0: i32) -> (i32, i32) {
    %c0_i32 = arith.constant 0 : i32
    %c0_i32_0 = arith.constant 0 : i32
    %c0_i32_1 = arith.constant 0 : i32
    return %c0_i32, %c0_i32_0 : i32, i32
  }
  func.func @transform_2(%arg0: i32) -> (i32, i32) {
    %c0_i32 = arith.constant 0 : i32
    %c0_i32_0 = arith.constant 0 : i32
    %c0_i32_1 = arith.constant 0 : i32
    return %c0_i32, %c0_i32_0 : i32, i32
  }
  func.func @transform_3(%arg0: i32) -> (i32, i32) {
    %c0_i32 = arith.constant 0 : i32
    %c0_i32_0 = arith.constant 0 : i32
    %c0_i32_1 = arith.constant 0 : i32
    return %c0_i32, %c0_i32_0 : i32, i32
  }
  func.func @transform_4(%arg0: i32) -> (i32, i32) {
    %c0_i32 = arith.constant 0 : i32
    %c0_i32_0 = arith.constant 0 : i32
    %c0_i32_1 = arith.constant 0 : i32
    return %c0_i32, %c0_i32_0 : i32, i32
  }
  func.func @transform_5(%arg0: i32) -> (i32, i32) {
    %c0_i32 = arith.constant 0 : i32
    %c0_i32_0 = arith.constant 0 : i32
    %c0_i32_1 = arith.constant 0 : i32
    return %c0_i32, %c0_i32_0 : i32, i32
  }
  func.func @transform_6(%arg0: i32) -> (i32, i32) {
    %c0_i32 = arith.constant 0 : i32
    %c0_i32_0 = arith.constant 0 : i32
    %c0_i32_1 = arith.constant 0 : i32
    return %c0_i32, %c0_i32_0 : i32, i32
  }
  func.func @transform_7(%arg0: i32) -> (i32, i32) {
    %c0_i32 = arith.constant 0 : i32
    %c0_i32_0 = arith.constant 0 : i32
    return %arg0, %c0_i32 : i32, i32
  }
}

</mosaic_0001>

<llo_original>
// kernel: tpu_custom_call.1
$region0: #{tpu_custom_call.1}
  #allocation0 [shape = 'u32[]', space=smem, size = 0x4, offset = 0x4, fixed_abs, tag = 'smem constant byte address 0x4 - core index']
  #allocation1 [shape = 'u32[144,128]{1,0:T(1,128)}', space=vmem, size = 0x12000, scoped, tag = 'internal scratch']
  %s0 = inlined_call_operand.vmem [shape: f32[8,8], index: 0, kind: input, shape index: {}]
  %s1 = inlined_call_operand.hbm [shape: f32[8,128], index: 1, kind: input, shape index: {}]
  %s2 = inlined_call_operand.vmem [shape: f32[1,128], index: 2, kind: input, shape index: {}]
  %s3 = inlined_call_operand.vmem [shape: bf16[128,128], index: 3, kind: input, shape index: {}]
  %s4 = inlined_call_operand.vmem [shape: f32[1,128], index: 4, kind: input, shape index: {}]
  %s5 = inlined_call_operand.vmem [shape: bf16[128,4], index: 5, kind: input, shape index: {}]
  %s6 = inlined_call_operand.vmem [shape: f32[1,4], index: 6, kind: input, shape index: {}]
  %s7 = inlined_call_operand.vmem [shape: f32[8,4], index: 7, kind: output, shape index: {}]
  %s8 = sld [smem:[#allocation0]]
  $region42: #{tpu_custom_call.1} parent=0
    _
  %s10 = ssub.s32 1, %s8
  %s11 = scalar_select 0, %s10, %s8
  $region1: #{tpu_custom_call.1} parent=0
    #allocation2 [shape = 'u8[4096]{0}', space=vmem, size = 0x1000, scoped, tag = 'input window, operand 1, single buffered']
    #allocation3 [shape = 's32[1]{0}', space=sflag, size = 0x4, scoped, tag = 'scoped memory for tpu_custom_call.1']
    %12 = vsyncpa [#allocation3], 0
    // Predicated region
    $region2: #{tpu_custom_call.1} parent=1 // pred_check
      _
    $region3: #{tpu_custom_call.1} parent=1 // pred_check_branch
      %14 = sbr.rel (0) target = $region5
    $region4: #{tpu_custom_call.1} parent=1 // pred_region
      _
    $region5: #{tpu_custom_call.1} parent=1 // pred_fallthru
      _
    // Predicated region
    $region6: #{tpu_custom_call.1} parent=1 // pred_check
      _
    $region7: #{tpu_custom_call.1} parent=1 // pred_check_branch
      %16 = sbr.rel (0) target = $region9
    $region8: #{tpu_custom_call.1} parent=1 // pred_region
      %s18 = ssub.s32 128, 128
      %19 = vsyncadd [#allocation3], %s18
      %s21 = sshll.u32 [#allocation2], 4
      %s22 = int_to_ptr.vmem [resolvable:$true] %s21
      %24 = dma.hbm_to_vmem [thread:$0]  %s1, 128, %s22, [#allocation3]
    $region9: #{tpu_custom_call.1} parent=1 // pred_fallthru
      _
    // Predicated region
    $region10: #{tpu_custom_call.1} parent=1 // pred_check
      _
    $region11: #{tpu_custom_call.1} parent=1 // pred_check_branch
      %26 = sbr.rel (0) target = $region13
    $region12: #{tpu_custom_call.1} parent=1 // pred_region
      _
    $region13: #{tpu_custom_call.1} parent=1 // pred_fallthru
      _
    // Predicated region
    $region14: #{tpu_custom_call.1} parent=1 // pred_check
      _
    $region15: #{tpu_custom_call.1} parent=1 // pred_check_branch
      %28 = sbr.rel (0) target = $region17
    $region16: #{tpu_custom_call.1} parent=1 // pred_region
      _
    $region17: #{tpu_custom_call.1} parent=1 // pred_fallthru
      _
    // Predicated region
    $region18: #{tpu_custom_call.1} parent=1 // pred_check
      _
    $region19: #{tpu_custom_call.1} parent=1 // pred_check_branch
      %30 = sbr.rel (0) target = $region21
    $region20: #{tpu_custom_call.1} parent=1 // pred_region
      _
    $region21: #{tpu_custom_call.1} parent=1 // pred_fallthru
      _
    // Predicated region
    $region22: #{tpu_custom_call.1} parent=1 // pred_check
      _
    $region23: #{tpu_custom_call.1} parent=1 // pred_check_branch
      %32 = sbr.rel (0) target = $region25
    $region24: #{tpu_custom_call.1} parent=1 // pred_region
      _
    $region25: #{tpu_custom_call.1} parent=1 // pred_fallthru
      _
    // Predicated region
    $region26: #{tpu_custom_call.1} parent=1 // pred_check
      _
    $region27: #{tpu_custom_call.1} parent=1 // pred_check_branch
      %34 = sbr.rel (0) target = $region29
    $region28: #{tpu_custom_call.1} parent=1 // pred_region
      _
    $region29: #{tpu_custom_call.1} parent=1 // pred_fallthru
      _
    // Predicated region
    $region30: #{tpu_custom_call.1} parent=1 // pred_check
      _
    $region31: #{tpu_custom_call.1} parent=1 // pred_check_branch
      %36 = sbr.rel (0) target = $region33
    $region32: #{tpu_custom_call.1} parent=1 // pred_region
      %37 = dma.done [#allocation3], 128
    $region33: #{tpu_custom_call.1} parent=1 // pred_fallthru
      _
    %v39 = vld [vmem:[%s0] sm:$0xff]
    %v40 = vld [vmem:[#allocation2] sm:$0xff]
    %42 = vset.pattern.permute.xlu0 0
    %43 = vperm.xlu0 %42, %v39
    %v44 = vpop.permute.xlu0 %43
    %v46 = vlaneseq
    %v47 = vshrl.u32 %v46, 7
    %v48 = vsub.s32 0, %v47
    %v49 = vrot.slane %v40, %v48
    %v50 = vmul.f32 %v44, %v49
    %v51 = vld [vmem:[%s2] sm:$0x1]
    %v53 = vlaneseq
    %v54 = vshrl.u32 %v53, 7
    %v55 = vsub.s32 0, %v54
    %v56 = vrot.slane %v51, %v55
    %v58 = vadd.f32 %v50, %v56
    %59 = vset.pattern.permute.xlu0 1
    %60 = vperm.xlu0 %59, %v39
    %v61 = vpop.permute.xlu0 %60
    %v63 = vlaneseq
    %v64 = vshrl.u32 %v63, 7
    %v65 = vsub.s32 1, %v64
    %v66 = vrot.slane %v40, %v65
    %v67 = vmul.f32 %v61, %v66
    %v68 = vadd.f32 %v58, %v67
    %69 = vset.pattern.permute.xlu0 2
    %70 = vperm.xlu0 %69, %v39
    %v71 = vpop.permute.xlu0 %70
    %v73 = vlaneseq
    %v74 = vshrl.u32 %v73, 7
    %v75 = vsub.s32 2, %v74
    %v76 = vrot.slane %v40, %v75
    %v77 = vmul.f32 %v71, %v76
    %v78 = vadd.f32 %v68, %v77
    %79 = vset.pattern.permute.xlu0 3
    %80 = vperm.xlu0 %79, %v39
    %v81 = vpop.permute.xlu0 %80
    %v83 = vlaneseq
    %v84 = vshrl.u32 %v83, 7
    %v85 = vsub.s32 3, %v84
    %v86 = vrot.slane %v40, %v85
    %v87 = vmul.f32 %v81, %v86
    %v88 = vadd.f32 %v78, %v87
    %89 = vset.pattern.permute.xlu0 4
    %90 = vperm.xlu0 %89, %v39
    %v91 = vpop.permute.xlu0 %90
    %v93 = vlaneseq
    %v94 = vshrl.u32 %v93, 7
    %v95 = vsub.s32 4, %v94
    %v96 = vrot.slane %v40, %v95
    %v97 = vmul.f32 %v91, %v96
    %v98 = vadd.f32 %v88, %v97
    %99 = vset.pattern.permute.xlu0 5
    %100 = vperm.xlu0 %99, %v39
    %v101 = vpop.permute.xlu0 %100
    %v103 = vlaneseq
    %v104 = vshrl.u32 %v103, 7
    %v105 = vsub.s32 5, %v104
    %v106 = vrot.slane %v40, %v105
    %v107 = vmul.f32 %v101, %v106
    %v108 = vadd.f32 %v98, %v107
    %109 = vset.pattern.permute.xlu0 6
    %110 = vperm.xlu0 %109, %v39
    %v111 = vpop.permute.xlu0 %110
    %v113 = vlaneseq
    %v114 = vshrl.u32 %v113, 7
    %v115 = vsub.s32 6, %v114
    %v116 = vrot.slane %v40, %v115
    %v117 = vmul.f32 %v111, %v116
    %v118 = vadd.f32 %v108, %v117
    %119 = vset.pattern.permute.xlu0 7
    %120 = vperm.xlu0 %119, %v39
    %v121 = vpop.permute.xlu0 %120
    %v123 = vlaneseq
    %v124 = vshrl.u32 %v123, 7
    %v125 = vsub.s32 7, %v124
    %v126 = vrot.slane %v40, %v125
    %v127 = vmul.f32 %v121, %v126
    %v128 = vadd.f32 %v118, %v127
    %v129 = vmax.f32 %v128, 0.0
    %v130 = vpack.c.bf16 %v129, %v129
    %v131 = vld [vmem:[%s3] sm:$0xf]
    %v132 = vld [vmem:[%s3 + $0x4] sm:$0xf]
    %v133 = vld [vmem:[%s3 + $0x8] sm:$0xf]
    %v134 = vld [vmem:[%s3 + $0xc] sm:$0xf]
    %v135 = vld [vmem:[%s3 + $0x10] sm:$0xf]
    %v136 = vld [vmem:[%s3 + $0x14] sm:$0xf]
    %v137 = vld [vmem:[%s3 + $0x18] sm:$0xf]
    %v138 = vld [vmem:[%s3 + $0x1c] sm:$0xf]
    %v139 = vld [vmem:[%s3 + $0x20] sm:$0xf]
    %v140 = vld [vmem:[%s3 + $0x24] sm:$0xf]
    %v141 = vld [vmem:[%s3 + $0x28] sm:$0xf]
    %v142 = vld [vmem:[%s3 + $0x2c] sm:$0xf]
    %v143 = vld [vmem:[%s3 + $0x30] sm:$0xf]
    %v144 = vld [vmem:[%s3 + $0x34] sm:$0xf]
    %v145 = vld [vmem:[%s3 + $0x38] sm:$0xf]
    %v146 = vld [vmem:[%s3 + $0x3c] sm:$0xf]
    %v147 = vld [vmem:[%s4] sm:$0x1]
    %v149 = vlaneseq
    %v150 = vshrl.u32 %v149, 7
    %v151 = vsub.s32 0, %v150
    %v152 = vrot.slane %v147, %v151
    %v170 = vunpack.c.l.b16 %v131
    %v171 = vunpack.c.l.b16 %v132
    %v172 = vunpack.c.l.b16 %v133
    %v173 = vunpack.c.l.b16 %v134
    %v174 = vunpack.c.l.b16 %v135
    %v175 = vunpack.c.l.b16 %v136
    %v176 = vunpack.c.l.b16 %v137
    %v177 = vunpack.c.l.b16 %v138
    %v178 = vunpack.c.l.b16 %v139
    %v179 = vunpack.c.l.b16 %v140
    %v180 = vunpack.c.l.b16 %v141
    %v181 = vunpack.c.l.b16 %v142
    %v182 = vunpack.c.l.b16 %v143
    %v183 = vunpack.c.l.b16 %v144
    %v184 = vunpack.c.l.b16 %v145
    %v185 = vunpack.c.l.b16 %v146
    %v186 = vpack.c.b16 %v171, %v170
    %v187 = vpack.c.b16 %v173, %v172
    %v188 = vpack.c.b16 %v175, %v174
    %v189 = vpack.c.b16 %v177, %v176
    %v190 = vpack.c.b16 %v179, %v178
    %v191 = vpack.c.b16 %v181, %v180
    %v192 = vpack.c.b16 %v183, %v182
    %v193 = vpack.c.b16 %v185, %v184
    %202 = vmatprep.subr.bf16.mxu0 0
    %203 = vmatpush1.bf16.msra.mxu0 %v186
    %204 = vmatprep.subr.bf16.mxu0 0
    %205 = vmatpush1.bf16.msra.mxu0 %v187
    %206 = vmatprep.subr.bf16.mxu0 0
    %207 = vmatpush1.bf16.msra.mxu0 %v188
    %208 = vmatprep.subr.bf16.mxu0 0
    %209 = vmatpush1.bf16.msra.mxu0 %v189
    %210 = vmatprep.subr.bf16.mxu0 0
    %211 = vmatpush1.bf16.msra.mxu0 %v190
    %212 = vmatprep.subr.bf16.mxu0 0
    %213 = vmatpush1.bf16.msra.mxu0 %v191
    %214 = vmatprep.subr.bf16.mxu0 0
    %215 = vmatpush1.bf16.msra.mxu0 %v192
    %216 = vmatprep.subr.bf16.mxu0 0
    %217 = vmatpush1.bf16.msra.mxu0 %v193
    %218 = vmatprep.subr.bf16.mxu0 0
    %219 = vmatpush1.bf16.msra.mxu0 0
    %220 = vmatprep.subr.bf16.mxu0 0
    %221 = vmatpush1.bf16.msra.mxu0 0
    %222 = vmatprep.subr.bf16.mxu0 0
    %223 = vmatpush1.bf16.msra.mxu0 0
    %224 = vmatprep.subr.bf16.mxu0 0
    %225 = vmatpush1.bf16.msra.mxu0 0
    %226 = vmatprep.subr.bf16.mxu0 0
    %227 = vmatpush1.bf16.msra.mxu0 0
    %228 = vmatprep.subr.bf16.mxu0 0
    %229 = vmatpush1.bf16.msra.mxu0 0
    %230 = vmatprep.subr.bf16.mxu0 0
    %231 = vmatpush1.bf16.msra.mxu0 0
    %232 = vmatprep.subr.bf16.mxu0 0
    %233 = vmatpush1.bf16.msra.mxu0 0
    %234 = vmatprep.mubr.bf16.mxu0 0
    %235 = vmatmul.mubr.bf16.gmra.mrb[0].mxu0 %v130
    %v236 = vpop.f32.mrb[0].mxu0
    %v237 = vadd.f32 %v152, %v236
    %v238 = vpop.f32.mrb[0].mxu0
    %v239 = vpop.f32.mrb[0].mxu0
    %v240 = vpop.f32.mrb[0].mxu0
    %241 = vdwg.mxu0
    %v242 = vmax.f32 %v237, 0.0
    %v243 = vpack.c.bf16 %v242, %v242
    %v244 = vld [vmem:[%s5] sm:$0xf]
    %v245 = vld [vmem:[%s5 + $0x4] sm:$0xf]
    %v246 = vld [vmem:[%s5 + $0x8] sm:$0xf]
    %v247 = vld [vmem:[%s5 + $0xc] sm:$0xf]
    %v248 = vld [vmem:[%s5 + $0x10] sm:$0xf]
    %v249 = vld [vmem:[%s5 + $0x14] sm:$0xf]
    %v250 = vld [vmem:[%s5 + $0x18] sm:$0xf]
    %v251 = vld [vmem:[%s5 + $0x1c] sm:$0xf]
    %v252 = vld [vmem:[%s5 + $0x20] sm:$0xf]
    %v253 = vld [vmem:[%s5 + $0x24] sm:$0xf]
    %v254 = vld [vmem:[%s5 + $0x28] sm:$0xf]
    %v255 = vld [vmem:[%s5 + $0x2c] sm:$0xf]
    %v256 = vld [vmem:[%s5 + $0x30] sm:$0xf]
    %v257 = vld [vmem:[%s5 + $0x34] sm:$0xf]
    %v258 = vld [vmem:[%s5 + $0x38] sm:$0xf]
    %v259 = vld [vmem:[%s5 + $0x3c] sm:$0xf]
    %v260 = vld [vmem:[%s6] sm:$0x1]
    %v262 = vlaneseq
    %v263 = vshrl.u32 %v262, 7
    %v264 = vsub.s32 0, %v263
    %v265 = vrot.slane %v260, %v264
    %v283 = vunpack.c.l.b16 %v244
    %v284 = vunpack.c.l.b16 %v245
    %v285 = vunpack.c.l.b16 %v246
    %v286 = vunpack.c.l.b16 %v247
    %v287 = vunpack.c.l.b16 %v248
    %v288 = vunpack.c.l.b16 %v249
    %v289 = vunpack.c.l.b16 %v250
    %v290 = vunpack.c.l.b16 %v251
    %v291 = vunpack.c.l.b16 %v252
    %v292 = vunpack.c.l.b16 %v253
    %v293 = vunpack.c.l.b16 %v254
    %v294 = vunpack.c.l.b16 %v255
    %v295 = vunpack.c.l.b16 %v256
    %v296 = vunpack.c.l.b16 %v257
    %v297 = vunpack.c.l.b16 %v258
    %v298 = vunpack.c.l.b16 %v259
    %v299 = vpack.c.b16 %v284, %v283
    %v300 = vpack.c.b16 %v286, %v285
    %v301 = vpack.c.b16 %v288, %v287
    %v302 = vpack.c.b16 %v290, %v289
    %v303 = vpack.c.b16 %v292, %v291
    %v304 = vpack.c.b16 %v294, %v293
    %v305 = vpack.c.b16 %v296, %v295
    %v306 = vpack.c.b16 %v298, %v297
    %315 = vmatprep.subr.bf16.mxu0 0
    %316 = vmatpush1.bf16.msra.mxu0 %v299
    %317 = vmatprep.subr.bf16.mxu0 0
    %318 = vmatpush1.bf16.msra.mxu0 %v300
    %319 = vmatprep.subr.bf16.mxu0 0
    %320 = vmatpush1.bf16.msra.mxu0 %v301
    %321 = vmatprep.subr.bf16.mxu0 0
    %322 = vmatpush1.bf16.msra.mxu0 %v302
    %323 = vmatprep.subr.bf16.mxu0 0
    %324 = vmatpush1.bf16.msra.mxu0 %v303
    %325 = vmatprep.subr.bf16.mxu0 0
    %326 = vmatpush1.bf16.msra.mxu0 %v304
    %327 = vmatprep.subr.bf16.mxu0 0
    %328 = vmatpush1.bf16.msra.mxu0 %v305
    %329 = vmatprep.subr.bf16.mxu0 0
    %330 = vmatpush1.bf16.msra.mxu0 %v306
    %331 = vmatprep.subr.bf16.mxu0 0
    %332 = vmatpush1.bf16.msra.mxu0 0
    %333 = vmatprep.subr.bf16.mxu0 0
    %334 = vmatpush1.bf16.msra.mxu0 0
    %335 = vmatprep.subr.bf16.mxu0 0
    %336 = vmatpush1.bf16.msra.mxu0 0
    %337 = vmatprep.subr.bf16.mxu0 0
    %338 = vmatpush1.bf16.msra.mxu0 0
    %339 = vmatprep.subr.bf16.mxu0 0
    %340 = vmatpush1.bf16.msra.mxu0 0
    %341 = vmatprep.subr.bf16.mxu0 0
    %342 = vmatpush1.bf16.msra.mxu0 0
    %343 = vmatprep.subr.bf16.mxu0 0
    %344 = vmatpush1.bf16.msra.mxu0 0
    %345 = vmatprep.subr.bf16.mxu0 0
    %346 = vmatpush1.bf16.msra.mxu0 0
    %347 = vmatprep.mubr.bf16.mxu0 0
    %348 = vmatmul.mubr.bf16.gmra.mrb[0].mxu0 %v243
    %v349 = vpop.f32.mrb[0].mxu0
    %v350 = vadd.f32 %v265, %v349
    %v351 = vpop.f32.mrb[0].mxu0
    %v352 = vpop.f32.mrb[0].mxu0
    %v353 = vpop.f32.mrb[0].mxu0
    %354 = vdwg.mxu0
    %vm355 = vcmask 31744
    %v356 = vsel %vm355, %v350, -inf
    %357 = vmax.xlane.f32.xlu0 %v356
    %v358 = vpop.xlane.xlu0 %357
    %v359 = vsub.f32 %v350, %v358
    %v360 = vmul.f32 %v359, 1.442695
    %v361 = vpow.pop %v360
    %v362 = vsel %vm355, %v361, 0.0
    %363 = vadd.xlane.f32.xlu0 %v362
    %v364 = vpop.xlane.xlu0 %363
    %v365 = vrcp.pop %v364
    %v366 = vmul.f32 %v361, %v365
    %367 = vst.msk [vmem:[%s7] sm:$0xff] %vm355, %v366
    // Predicated region
    $region34: #{tpu_custom_call.1} parent=1 // pred_check
      _
    $region35: #{tpu_custom_call.1} parent=1 // pred_check_branch
      %369 = sbr.rel (0) target = $region37
    $region36: #{tpu_custom_call.1} parent=1 // pred_region
      _
    $region37: #{tpu_custom_call.1} parent=1 // pred_fallthru
      _
    // Predicated region
    $region38: #{tpu_custom_call.1} parent=1 // pred_check
      _
    $region39: #{tpu_custom_call.1} parent=1 // pred_check_branch
      %371 = sbr.rel (0) target = $region41
    $region40: #{tpu_custom_call.1} parent=1 // pred_region
      _
    $region41: #{tpu_custom_call.1} parent=1 // pred_fallthru
      _
    %372 = vsyncpa [#allocation3], 1

</llo_original>
